<compile_context>
chip_gen: v6e
topology: v6e:2x2x1
jax: 0.10.0
libtpu: 0.0.40
codegen_flags: <defaults>
</compile_context>

<pallas_src>
import functools

import jax
import jax.numpy as jnp
import numpy as np
from jax.experimental import pallas as pl
from jax.experimental.pallas import tpu as pltpu
from jax.scipy.linalg import block_diag


def _shuffle_attn_kernel(x_ref, wt_ref, b_ref, o_ref, *, inv_hw):
    # x_ref: (TB, C, HW)   wt_ref: (C, C) == W_eff.T   b_ref: (1, C)   o_ref: (TB, C, HW)
    x = x_ref[...]
    # AdaptiveAvgPool2d(1): f32-accumulated spatial sum over the true HW extent (no padding).
    pooled = jnp.sum(x.astype(jnp.float32), axis=-1) * inv_hw                     # (TB, C) f32
    # Fused shuffle + grouped 1x1 conv + rearrange, row form (no degenerate N=1 matvec).
    g = jnp.dot(pooled.astype(wt_ref.dtype), wt_ref[...],
                preferred_element_type=jnp.float32) + b_ref[...]
    gate = jax.nn.sigmoid(g)                                                      # (TB, C) f32
    # Streaming multiply in x.dtype (bf16-native on v6e/v7x; stays f32 for f32 inputs).
    o_ref[...] = (x * gate.astype(x.dtype)[:, :, None]).astype(o_ref.dtype)


def _resident_spec(shape):
    """Constant-index (grid-resident) BlockSpec; single-buffered when pl.Buffered exists."""
    index_map = lambda i: (0,) * len(shape)
    if hasattr(pl, "Buffered"):
        try:
            return pl.BlockSpec(shape, index_map, pipeline_mode=pl.Buffered(1))
        except TypeError:   # older jax without pipeline_mode kwarg: fall back cleanly
            pass
    return pl.BlockSpec(shape, index_map)


def shuffle_attn_pallas(x_nchw, conv_w, conv_b, group, *,
                        target_block_bytes=6 << 20, weight_dtype=None):
    """x_nchw: (B, C, H, W); conv_w: (C_out, C_in // group); conv_b: (C_out,)."""
    B, C, H, W = x_nchw.shape
    C_out = conv_w.shape[0]
    assert C % group == 0 and C_out % group == 0
    assert C_out == C, "broadcast multiply in forward requires out_features == in_features"
    gci = C // group
    gco = C_out // group
    HW = H * W

    if weight_dtype is None:
        weight_dtype = jnp.bfloat16 if x_nchw.dtype == jnp.bfloat16 else jnp.float32

    # ---- trace-time glue: fold shuffle + grouped conv + rearrange into W_eff, b_eff ----
    # channel_shuffle sends source channel c -> (c % g) * gci + (c // g)  (acts on pooled vec).
    c = np.arange(C)
    shuffle_dest = (c % group) * gci + (c // group)
    # channel_rearrange sends source channel o -> (o % gco) * g + (o // gco)  (acts on gate).
    co = np.arange(C_out)
    rearr_dest = (co % gco) * group + (co // gco)
    rearr_inv = np.argsort(rearr_dest)                       # inverse permutation
    # Grouped 1x1 conv as a block-diagonal matrix; absorb both permutations: R @ W @ S.
    # TODO(synk): for very large C, keep the (group, gco, gci) blocks instead of densifying
    # (dense W_eff costs group-x extra VMEM/FLOPs; irrelevant while HBM-bound at typical C).
    W_dense = block_diag(*[conv_w[gi * gco:(gi + 1) * gco, :].astype(jnp.float32)
                           for gi in range(group)])          # (C_out, C)
    W_eff = W_dense[rearr_inv][:, shuffle_dest]
    Wt = W_eff.T.astype(weight_dtype)                        # (C, C), used in row form
    b_eff = conv_b.astype(jnp.float32)[rearr_inv].reshape(1, C_out)

    # ---- layout: (B, C, HW), spatial flattened onto the lane axis; NO pad / slice passes ----
    x_flat = x_nchw.reshape(B, C, HW)
    itemsize = x_flat.dtype.itemsize
    bytes_per_b = C * HW * itemsize

    # ---- batch tiling: multi-MiB slabs, >= 4 grid steps when possible, ragged tail OK ----
    tb_cap = max(1, target_block_bytes // bytes_per_b)
    if B >= 4:
        tb_cap = min(tb_cap, max(1, B // 4))    # >= 4 steps -> 2 per v7x TensorCore
    elif B >= 2:
        tb_cap = min(tb_cap, max(1, B // 2))    # keep at least 2 steps for double-buffering
    TB = int(min(tb_cap, B))

    # VMEM budget: 2x(in block) + 2x(out block) + weights (+margin), capped at ~48 MiB so
    # there is headroom on v7x's 64 MiB physical VMEM for Mosaic scratch / semaphores.
    w_itemsize = jnp.dtype(weight_dtype).itemsize
    w_bytes = C * C * w_itemsize + C_out * 4
    while TB > 1 and 4 * TB * bytes_per_b + 2 * w_bytes > (44 << 20):
        TB //= 2
    block_bytes = TB * bytes_per_b
    vmem_limit = int(min(48 << 20,
                         max(16 << 20, 4 * block_bytes + 2 * w_bytes + (4 << 20))))

    # Ragged last block: OOB input rows are garbage, but they only produce gate rows whose
    # output writes Pallas drops — safe by construction.
    grid = (pl.cdiv(B, TB),)

    kernel = functools.partial(_shuffle_attn_kernel, inv_hw=float(1.0 / HW))

    cost = pl.CostEstimate(
        flops=int(2 * B * C * C + 2 * B * C * HW),
        transcendentals=int(B * C),
        bytes_accessed=int(2 * B * C * HW * itemsize + C * C * w_itemsize),
    )

    out_flat = pl.pallas_call(
        kernel,
        out_shape=jax.ShapeDtypeStruct((B, C, HW), x_nchw.dtype),
        grid_spec=pltpu.PrefetchScalarGridSpec(
            num_scalar_prefetch=0,
            grid=grid,
            in_specs=[
                pl.BlockSpec((TB, C, HW), lambda i: (i, 0, 0)),
                _resident_spec((C, C)),          # W_eff.T, resident across all grid steps
                _resident_spec((1, C_out)),      # bias, resident across all grid steps
            ],
            out_specs=pl.BlockSpec((TB, C, HW), lambda i: (i, 0, 0)),
        ),
        compiler_params=pltpu.CompilerParams(
            dimension_semantics=("parallel",),
            vmem_limit_bytes=vmem_limit),
        cost_estimate=cost,
    )(x_flat, Wt, b_eff)

    return out_flat.reshape(B, C, H, W)


def shuffle_attn_reference(x_nchw, conv_w, conv_b, group):
    """Pure-JAX mirror of the PyTorch forward (for correctness check)."""
    B, C, H, W = x_nchw.shape
    gc = C // group
    # channel_shuffle: reshape(B, C//g, g, H, W) -> permute(0,2,1,3,4) -> reshape
    xs = x_nchw.reshape(B, gc, group, H, W).transpose(0, 2, 1, 3, 4).reshape(B, C, H, W)
    pooled = xs.mean(axis=(2, 3))                              # (B, C)
    C_out = conv_w.shape[0]
    gco = C_out // group
    gci = C // group
    y = jnp.zeros((B, C_out), dtype=jnp.float32)
    for gi in range(group):
        y = y.at[:, gi * gco:(gi + 1) * gco].set(
            pooled[:, gi * gci:(gi + 1) * gci] @ conv_w[gi * gco:(gi + 1) * gco].T
            + conv_b[gi * gco:(gi + 1) * gco])
    gate = jax.nn.sigmoid(y)
    # channel_rearrange: reshape(B, g, C//g) -> permute -> reshape
    gate = gate.reshape(B, group, gco).transpose(0, 2, 1).reshape(B, C_out)
    return x_nchw * gate[:, :, None, None]


if __name__ == "__main__":
    # Small shapes consistent with the module: B=2, C_in=C_out=8, H=W=16, group=4.
    B, C, H, W = 2, 8, 16, 16
    GROUP = 4

    key = jax.random.PRNGKey(0)
    kx, kw, kb = jax.random.split(key, 3)
    x = jax.random.normal(kx, (B, C, H, W), dtype=jnp.float32)
    # Grouped Conv2d(in=C, out=C, groups=GROUP, kernel=1): weight (C, C//GROUP, 1, 1), bias (C,)
    conv_w = 0.3 * jax.random.normal(kw, (C, C // GROUP), dtype=jnp.float32)
    conv_b = 0.1 * jax.random.normal(kb, (C,), dtype=jnp.float32)

    out = shuffle_attn_pallas(x, conv_w, conv_b, GROUP)
    out = jax.block_until_ready(out)

    ref = shuffle_attn_reference(x, conv_w, conv_b, GROUP)
    np.testing.assert_allclose(np.asarray(out), np.asarray(ref), rtol=1e-5, atol=1e-5)

    print("KERNEL_OK")
</pallas_src>

<mosaic_0001>
module attributes {stable_mosaic.version = 11 : i64} {
  func.func @_shuffle_attn_kernel(%arg0: i32, %arg1: memref<1x8x256xf32, #tpu.memory_space<vmem>>, %arg2: memref<8x8xf32, #tpu.memory_space<vmem>>, %arg3: memref<1x8xf32, #tpu.memory_space<vmem>>, %arg4: memref<1x8x256xf32, #tpu.memory_space<vmem>>) attributes {dimension_semantics = [#tpu.dimension_semantics<parallel>], iteration_bounds = array<i64: 2>, scalar_prefetch = 0 : i64, scratch_operands = 0 : i64, tpu.core_type = #tpu.core_type<tc>, window_params = [{transform_indices = @transform_0, window_bounds = array<i64: 1, 8, 256>}, {pipeline_mode = #tpu.pipeline_mode<synchronous>, transform_indices = @transform_1, window_bounds = array<i64: 8, 8>}, {pipeline_mode = #tpu.pipeline_mode<synchronous>, transform_indices = @transform_2, window_bounds = array<i64: 1, 8>}, {transform_indices = @transform_3, window_bounds = array<i64: 1, 8, 256>}]} {
    %c0 = arith.constant 0 : index
    %c0_0 = arith.constant 0 : index
    %c0_1 = arith.constant 0 : index
    %0 = vector.load %arg1[%c0, %c0_0, %c0_1] : memref<1x8x256xf32, #tpu.memory_space<vmem>>, vector<1x8x256xf32>
    %cst = arith.constant dense<0.000000e+00> : vector<1x8xf32>
    %1 = vector.multi_reduction <add>, %0, %cst [2] : vector<1x8x256xf32> to vector<1x8xf32>
    %cst_2 = arith.constant 3.906250e-03 : f32
    %2 = vector.broadcast %cst_2 : f32 to vector<1x8xf32>
    %3 = arith.mulf %1, %2 : vector<1x8xf32>
    %c0_3 = arith.constant 0 : index
    %c0_4 = arith.constant 0 : index
    %4 = vector.load %arg2[%c0_3, %c0_4] : memref<8x8xf32, #tpu.memory_space<vmem>>, vector<8x8xf32>
    %cst_5 = arith.constant dense<0.000000e+00> : vector<1x8xf32>
    %5 = tpu.matmul %3, %4, %cst_5 {dimension_numbers = #tpu.dot_dimension_numbers<[1], [0], [0], [1], [0, 0, 1, 1], [], []>} : vector<1x8xf32>, vector<8x8xf32>, vector<1x8xf32> -> vector<1x8xf32>
    %c0_6 = arith.constant 0 : index
    %c0_7 = arith.constant 0 : index
    %6 = vector.load %arg3[%c0_6, %c0_7] : memref<1x8xf32, #tpu.memory_space<vmem>>, vector<1x8xf32>
    %7 = arith.addf %5, %6 : vector<1x8xf32>
    %8 = arith.negf %7 : vector<1x8xf32>
    %9 = math.exp %8 : vector<1x8xf32>
    %cst_8 = arith.constant 1.000000e+00 : f32
    %10 = vector.broadcast %cst_8 : f32 to vector<1x8xf32>
    %11 = arith.addf %10, %9 : vector<1x8xf32>
    %12 = arith.divf %10, %11 : vector<1x8xf32>
    %13 = vector.shape_cast %12 : vector<1x8xf32> to vector<1x8x1xf32>
    %14 = vector.broadcast %13 : vector<1x8x1xf32> to vector<1x8x256xf32>
    %15 = arith.mulf %0, %14 : vector<1x8x256xf32>
    %c0_9 = arith.constant 0 : index
    %c0_10 = arith.constant 0 : index
    %c0_11 = arith.constant 0 : index
    %16 = vector.load %arg4[%c0_9, %c0_10, %c0_11] : memref<1x8x256xf32, #tpu.memory_space<vmem>>, vector<1x8x256xf32>
    tpu.vector_store %arg4[%c0_9, %c0_10, %c0_11], %15 {strides = array<i32>} : memref<1x8x256xf32, #tpu.memory_space<vmem>>, vector<1x8x256xf32>,
    return
  }
  func.func @transform_0(%arg0: i32) -> (i32, i32, i32) {
    %c0_i32 = arith.constant 0 : i32
    %c0_i32_0 = arith.constant 0 : i32
    %c0_i32_1 = arith.constant 0 : i32
    return %arg0, %c0_i32, %c0_i32_0 : i32, i32, i32
  }
  func.func @transform_1(%arg0: i32) -> (i32, i32) {
    %c0_i32 = arith.constant 0 : i32
    %c0_i32_0 = arith.constant 0 : i32
    %c0_i32_1 = arith.constant 0 : i32
    return %c0_i32, %c0_i32_0 : i32, i32
  }
  func.func @transform_2(%arg0: i32) -> (i32, i32) {
    %c0_i32 = arith.constant 0 : i32
    %c0_i32_0 = arith.constant 0 : i32
    %c0_i32_1 = arith.constant 0 : i32
    return %c0_i32, %c0_i32_0 : i32, i32
  }
  func.func @transform_3(%arg0: i32) -> (i32, i32, i32) {
    %c0_i32 = arith.constant 0 : i32
    %c0_i32_0 = arith.constant 0 : i32
    %c0_i32_1 = arith.constant 0 : i32
    return %arg0, %c0_i32, %c0_i32_0 : i32, i32, i32
  }
}

</mosaic_0001>

<llo_original>
// kernel: tpu_custom_call.1
$region0: #{tpu_custom_call.1}
  #allocation0 [shape = 'u32[]', space=smem, size = 0x4, offset = 0x4, fixed_abs, tag = 'smem constant byte address 0x4 - core index']
  #allocation1 [shape = 'u32[144,128]{1,0:T(1,128)}', space=vmem, size = 0x12000, scoped, tag = 'internal scratch']
  %s0 = inlined_call_operand.hbm [shape: f32[2,8,256], index: 0, kind: input, shape index: {}]
  %s1 = inlined_call_operand.hbm [shape: f32[8,8], index: 1, kind: input, shape index: {}]
  %s2 = inlined_call_operand.vmem [shape: f32[1,8], index: 2, kind: input, shape index: {}]
  %s3 = inlined_call_operand.hbm [shape: f32[2,8,256], index: 3, kind: output, shape index: {}]
  %s4 = sld [smem:[#allocation0]]
  $region53: #{tpu_custom_call.1} parent=0
    _
  %s6 = ssub.s32 1, %s4
  %s7 = scalar_select 0, %s6, %s4
  $region1: #{tpu_custom_call.1} parent=0
    #allocation2 [shape = 'u8[16384]{0}', space=vmem, size = 0x4000, scoped, tag = 'input window, operand 0']
    #allocation3 [shape = 's32[2]{0}', space=sflag, size = 0x8, scoped, tag = 'scoped memory for tpu_custom_call.1']
    #allocation4 [shape = 's32[2]{0}', space=sflag, size = 0x8, scoped, tag = 'scoped memory for tpu_custom_call.1']
    #allocation5 [shape = 'u8[4096]{0}', space=vmem, size = 0x1000, scoped, tag = 'input window, operand 1, single buffered']
    #allocation6 [shape = 's32[1]{0}', space=sflag, size = 0x4, scoped, tag = 'scoped memory for tpu_custom_call.1']
    #allocation7 [shape = 'u8[16384]{0}', space=vmem, size = 0x4000, scoped, tag = 'output window, operand 0']
    %8 = vsyncpa [#allocation3], 0
    %s9 = scalar_lea.sflag [#allocation3], 1
    %10 = vsyncpa %s9, 0
    %11 = vsyncpa [#allocation6], 0
    %12 = vsyncpa [#allocation4], 0
    %s13 = scalar_lea.sflag [#allocation4], 1
    %14 = vsyncpa %s13, 0
    loop: start=0, step=1, limit=4
    $region2: #{tpu_custom_call.1} parent=1 // loop_pre_header
      _
    $region3: #{tpu_custom_call.1} parent=1 // loop_header
      %s16 = sphi 0, %s20
      %p17 = scmp.ge.s32.totalorder %s16, 4
      %s26 = sphi 0, %s28
      %s29 = sphi 0, %s26
      %s30 = sphi 0, %s29
      %s46 = sphi 0, %s30
      %s50 = sphi 0, %s50
      %s52 = sphi 0, %s50
      %s53 = sphi 0, %s52
      %s67 = sphi 0, %s53
      %s71 = sphi 0, %s71
      %s73 = sphi 0, %s71
      %s74 = sphi 0, %s73
      %s88 = sphi 0, %s74
      %s94 = sphi 0, %s96
      %s97 = sphi 0, %s94
      %s98 = sphi 0, %s97
      %s114 = sphi 0, %s98
    $region4: #{tpu_custom_call.1} parent=1 // loop_header_branch
      %19 = sbr.rel (%p17) target = $region8
    $region5: #{tpu_custom_call.1} parent=1 // loop_body
      %s21 = ssub.s32 %s16, 1
      %s22 = ssub.s32 %s16, 2
      %s23 = sadd.s32 %s16, 1
      %s24 = ssub.s32 %s16, %s23
      %p25 = scmp.eq.s32.totalorder %s24, 0
      %s27 = sadd.s32 %s26, 1
      %s28 = scalar_select %p25, %s26, %s27
      %p31 = pneg %p25
      %p32 = scmp.eq.s32.totalorder %s16, 1
      %p33 = por %p31, %p32
      %p34 = scmp.ne.s32.totalorder %s26, %s29
      %p35 = scmp.eq.s32.totalorder %s16, 0
      %p36 = por %p34, %p35
      %p37 = scmp.ne.s32.totalorder %s26, %s29
      %p38 = scmp.eq.s32.totalorder %s21, 1
      %p39 = por %p37, %p38
      %p40 = scmp.ne.s32.totalorder %s29, %s30
      %p41 = scmp.eq.s32.totalorder %s21, 0
      %p42 = por %p40, %p41
      %p43 = scmp.ne.s32.totalorder %s29, %s30
      %p44 = scmp.eq.s32.totalorder %s22, 1
      %p45 = por %p43, %p44
      %p47 = scmp.ne.s32.totalorder %s30, %s46
      %p48 = scmp.eq.s32.totalorder %s22, 0
      %p49 = por %p47, %p48
      %s51 = sadd.s32 %s50, 1
      %p54 = scmp.eq.s32.totalorder %s16, 1
      %p55 = scmp.ne.s32.totalorder %s50, %s52
      %p56 = scmp.eq.s32.totalorder %s16, 0
      %p57 = por %p55, %p56
      %p58 = scmp.ne.s32.totalorder %s50, %s52
      %p59 = scmp.eq.s32.totalorder %s21, 1
      %p60 = por %p58, %p59
      %p61 = scmp.ne.s32.totalorder %s52, %s53
      %p62 = scmp.eq.s32.totalorder %s21, 0
      %p63 = por %p61, %p62
      %p64 = scmp.ne.s32.totalorder %s52, %s53
      %p65 = scmp.eq.s32.totalorder %s22, 1
      %p66 = por %p64, %p65
      %p68 = scmp.ne.s32.totalorder %s53, %s67
      %p69 = scmp.eq.s32.totalorder %s22, 0
      %p70 = por %p68, %p69
      %s72 = sadd.s32 %s71, 1
      %p75 = scmp.eq.s32.totalorder %s16, 1
      %p76 = scmp.ne.s32.totalorder %s71, %s73
      %p77 = scmp.eq.s32.totalorder %s16, 0
      %p78 = por %p76, %p77
      %p79 = scmp.ne.s32.totalorder %s71, %s73
      %p80 = scmp.eq.s32.totalorder %s21, 1
      %p81 = por %p79, %p80
      %p82 = scmp.ne.s32.totalorder %s73, %s74
      %p83 = scmp.eq.s32.totalorder %s21, 0
      %p84 = por %p82, %p83
      %p85 = scmp.ne.s32.totalorder %s73, %s74
      %p86 = scmp.eq.s32.totalorder %s22, 1
      %p87 = por %p85, %p86
      %p89 = scmp.ne.s32.totalorder %s74, %s88
      %p90 = scmp.eq.s32.totalorder %s22, 0
      %p91 = por %p89, %p90
      %s92 = ssub.s32 %s16, %s23
      %p93 = scmp.eq.s32.totalorder %s92, 0
      %s95 = sadd.s32 %s94, 1
      %s96 = scalar_select %p93, %s94, %s95
      %p99 = pneg %p93
      %p100 = scmp.eq.s32.totalorder %s16, 1
      %p101 = por %p99, %p100
      %p102 = scmp.ne.s32.totalorder %s94, %s97
      %p103 = scmp.eq.s32.totalorder %s16, 0
      %p104 = por %p102, %p103
      %p105 = scmp.ne.s32.totalorder %s94, %s97
      %p106 = scmp.eq.s32.totalorder %s21, 1
      %p107 = por %p105, %p106
      %p108 = scmp.ne.s32.totalorder %s97, %s98
      %p109 = scmp.eq.s32.totalorder %s21, 0
      %p110 = por %p108, %p109
      %p111 = scmp.ne.s32.totalorder %s97, %s98
      %p112 = scmp.eq.s32.totalorder %s22, 1
      %p113 = por %p111, %p112
      %p115 = scmp.ne.s32.totalorder %s98, %s114
      %p116 = scmp.eq.s32.totalorder %s22, 0
      %p117 = por %p115, %p116
      %p118 = scmp.le.s32.totalorder 1, %s16
      %p119 = scmp.lt.s32.totalorder %s16, 3
      %p120 = pnand %p118, %p119
      %p121 = pneg %p120
      // Predicated region
      $region9: #{tpu_custom_call.1} parent=5 // pred_check
        _
      $region10: #{tpu_custom_call.1} parent=5 // pred_check_branch
        %123 = sbr.rel (%p120) target = $region12
      $region11: #{tpu_custom_call.1} parent=5 // pred_region
        %s124 = ssub.s32 %s16, 1
        // Predicated region
        $region13: #{tpu_custom_call.1} parent=11 // pred_check
          %p125 = pneg %p63
        $region14: #{tpu_custom_call.1} parent=11 // pred_check_branch
          %127 = sbr.rel (%p125) target = $region16
        $region15: #{tpu_custom_call.1} parent=11 // pred_region
          %s129 = ssub.s32 128, 128
          %130 = vsyncadd [#allocation6], %s129
          %s132 = sshll.u32 [#allocation5], 4
          %s133 = int_to_ptr.vmem [resolvable:$true] %s132
          %135 = dma.hbm_to_vmem [thread:$0]  %s1, 128, %s133, [#allocation6]
        $region16: #{tpu_custom_call.1} parent=11 // pred_fallthru
          _
        // Predicated region
        $region17: #{tpu_custom_call.1} parent=11 // pred_check
          %p136 = pneg %p84
        $region18: #{tpu_custom_call.1} parent=11 // pred_check_branch
          %138 = sbr.rel (%p136) target = $region20
        $region19: #{tpu_custom_call.1} parent=11 // pred_region
          _
        $region20: #{tpu_custom_call.1} parent=11 // pred_fallthru
          _
      $region12: #{tpu_custom_call.1} parent=5 // pred_fallthru
        _
      %p139 = scmp.lt.s32.totalorder %s16, 2
      // Predicated region
      $region21: #{tpu_custom_call.1} parent=5 // pred_check
        %p140 = pneg %p139
      $region22: #{tpu_custom_call.1} parent=5 // pred_check_branch
        %142 = sbr.rel (%p140) target = $region24
      $region23: #{tpu_custom_call.1} parent=5 // pred_region
        // Predicated region
        $region25: #{tpu_custom_call.1} parent=23 // pred_check
          %p143 = pneg %p36
        $region26: #{tpu_custom_call.1} parent=23 // pred_check_branch
          %145 = sbr.rel (%p143) target = $region28
        $region27: #{tpu_custom_call.1} parent=23 // pred_region
          %s146 = sand.u32 %s26, 1
          %s147 = scalar_lea.sflag [#allocation3], %s146
          %s148 = sand.u32 %s26, 1
          %s149 = smul.addr %s148, 16
          %s150 = scalar_lea.vmem [#allocation2], %s149
          %s152 = ssub.s32 256, 256
          %153 = vsyncadd %s147, %s152
          %s154 = smul.addr %s16, 2
          %s155 = smul.addr %s154, 128
          %s156 = scalar_lea.hbm %s0, %s155
          %s158 = sshll.u32 %s150, 4
          %s159 = int_to_ptr.vmem [resolvable:$true] %s158
          %161 = dma.hbm_to_vmem [thread:$0]  %s156, 256, %s159, %s147
        $region28: #{tpu_custom_call.1} parent=23 // pred_fallthru
          _
      $region24: #{tpu_custom_call.1} parent=5 // pred_fallthru
        _
      %p162 = scmp.le.s32.totalorder 1, %s16
      %p163 = scmp.lt.s32.totalorder %s16, 3
      %p164 = pnand %p162, %p163
      %p165 = pneg %p164
      // Predicated region
      $region29: #{tpu_custom_call.1} parent=5 // pred_check
        _
      $region30: #{tpu_custom_call.1} parent=5 // pred_check_branch
        %167 = sbr.rel (%p164) target = $region32
      $region31: #{tpu_custom_call.1} parent=5 // pred_region
        %s168 = ssub.s32 %s16, 1
        %s169 = sand.u32 %s29, 1
        %s170 = scalar_lea.sflag [#allocation3], %s169
        %s171 = sand.u32 %s29, 1
        %s172 = smul.addr %s171, 16
        %s173 = scalar_lea.vmem [#allocation2], %s172
        // Predicated region
        $region33: #{tpu_custom_call.1} parent=31 // pred_check
          %p174 = pneg %p42
        $region34: #{tpu_custom_call.1} parent=31 // pred_check_branch
          %176 = sbr.rel (%p174) target = $region36
        $region35: #{tpu_custom_call.1} parent=31 // pred_region
          %177 = dma.done %s170, 256
        $region36: #{tpu_custom_call.1} parent=31 // pred_fallthru
          _
        // Predicated region
        $region37: #{tpu_custom_call.1} parent=31 // pred_check
          %p178 = pneg %p63
        $region38: #{tpu_custom_call.1} parent=31 // pred_check_branch
          %180 = sbr.rel (%p178) target = $region40
        $region39: #{tpu_custom_call.1} parent=31 // pred_region
          %181 = dma.done [#allocation6], 128
        $region40: #{tpu_custom_call.1} parent=31 // pred_fallthru
          _
        %s182 = sand.u32 %s29, 1
        %s183 = scalar_lea.sflag [#allocation3], %s182
        %s184 = sand.u32 %s29, 1
        %s185 = smul.addr %s184, 16
        %s186 = scalar_lea.vmem [#allocation2], %s185
        %p187 = pneg %p42
        %p188 = pneg %p39
        %p189 = pneg %p63
        %p190 = pneg %p60
        %p191 = pneg %p84
        %p192 = pneg %p81
        %p193 = pneg %p110
        %p194 = pneg %p107
        %s195 = sand.u32 %s97, 1
        %s196 = scalar_lea.sflag [#allocation4], %s195
        %s197 = sand.u32 %s97, 1
        %s198 = smul.addr %s197, 16
        %s199 = scalar_lea.vmem [#allocation7], %s198
        %v200 = vld [vmem:[%s173] sm:$0xff]
        %v201 = vld [vmem:[%s173 + $0x8] sm:$0xff]
        %v202 = vadd.f32 %v200, %v201
        %203 = vadd.xlane.f32.xlu0 %v202
        %v204 = vpop.xlane.xlu0 %203
        %v205 = vmul.f32 %v204, 0.00390625
        %v206 = vld [vmem:[#allocation5] sm:$0xff]
        %v207 = vld [vmem:[%s2] sm:$0x1]
        %v209 = vlaneseq
        %v210 = vand.u32 %v209, 127
        %v211 = vlaneseq
        %v212 = vshrl.u32 %v211, 7
        %v213 = vsub.s32 %v210, %v212
        %v214 = vrot.slane %v205, %v213
        %vm215 = vcmask 64512
        %v216 = vsel %vm215, %v214, 0
        %218 = vmatprep.subr.mxu0 0.0
        %219 = vmatpush1.msra.mxu0 0.0
        %220 = vmatprep.subr.mxu0 0.0
        %221 = vmatpush1.msra.mxu0 0.0
        %222 = vmatprep.subr.mxu0 0.0
        %223 = vmatpush1.msra.mxu0 0.0
        %224 = vmatprep.subr.mxu0 0.0
        %225 = vmatpush1.msra.mxu0 0.0
        %226 = vmatprep.subr.mxu0 0.0
        %227 = vmatpush1.msra.mxu0 0.0
        %228 = vmatprep.subr.mxu0 0.0
        %229 = vmatpush1.msra.mxu0 0.0
        %230 = vmatprep.subr.mxu0 0.0
        %231 = vmatpush1.msra.mxu0 0.0
        %232 = vmatprep.subr.mxu0 0.0
        %233 = vmatpush1.msra.mxu0 0.0
        %234 = vmatprep.subr.mxu0 0.0
        %235 = vmatpush1.msra.mxu0 0.0
        %236 = vmatprep.subr.mxu0 0.0
        %237 = vmatpush1.msra.mxu0 0.0
        %238 = vmatprep.subr.mxu0 0.0
        %239 = vmatpush1.msra.mxu0 0.0
        %240 = vmatprep.subr.mxu0 0.0
        %241 = vmatpush1.msra.mxu0 0.0
        %242 = vmatprep.subr.mxu0 0.0
        %243 = vmatpush1.msra.mxu0 0.0
        %244 = vmatprep.subr.mxu0 0.0
        %245 = vmatpush1.msra.mxu0 0.0
        %246 = vmatprep.subr.mxu0 0.0
        %247 = vmatpush1.msra.mxu0 0.0
        %248 = vmatprep.subr.mxu0 0.0
        %249 = vmatpush1.msra.mxu0 %v206
        %250 = vmatprep.subr.mxu0 0.0
        %251 = vmatpush2.msra.mxu0 0.0
        %252 = vmatprep.subr.mxu0 0.0
        %253 = vmatpush2.msra.mxu0 0.0
        %254 = vmatprep.subr.mxu0 0.0
        %255 = vmatpush2.msra.mxu0 0.0
        %256 = vmatprep.subr.mxu0 0.0
        %257 = vmatpush2.msra.mxu0 0.0
        %258 = vmatprep.subr.mxu0 0.0
        %259 = vmatpush2.msra.mxu0 0.0
        %260 = vmatprep.subr.mxu0 0.0
        %261 = vmatpush2.msra.mxu0 0.0
        %262 = vmatprep.subr.mxu0 0.0
        %263 = vmatpush2.msra.mxu0 0.0
        %264 = vmatprep.subr.mxu0 0.0
        %265 = vmatpush2.msra.mxu0 0.0
        %266 = vmatprep.subr.mxu0 0.0
        %267 = vmatpush2.msra.mxu0 0.0
        %268 = vmatprep.subr.mxu0 0.0
        %269 = vmatpush2.msra.mxu0 0.0
        %270 = vmatprep.subr.mxu0 0.0
        %271 = vmatpush2.msra.mxu0 0.0
        %272 = vmatprep.subr.mxu0 0.0
        %273 = vmatpush2.msra.mxu0 0.0
        %274 = vmatprep.subr.mxu0 0.0
        %275 = vmatpush2.msra.mxu0 0.0
        %276 = vmatprep.subr.mxu0 0.0
        %277 = vmatpush2.msra.mxu0 0.0
        %278 = vmatprep.subr.mxu0 0.0
        %279 = vmatpush2.msra.mxu0 0.0
        %280 = vmatprep.subr.mxu0 0.0
        %281 = vmatpush2.msra.mxu0 0.0
        %282 = vmatprep.mubr.f32.mxu0 0.0
        %283 = vmatmul.mubr.f32.gmra.mxu0 %v216
        %v284 = vpop.f32.mrf.mxu0
        %v285 = vadd.f32 %v207, %v284
        %v286 = vpop.f32.mrf.mxu0
        %287 = vdwg.mxu0
        %v288 = vxor.u32 %v285, 2147483648
        %v289 = vmul.f32 %v288, 1.442695
        %v290 = vpow.pop %v289
        %v291 = vadd.f32 %v290, 1.0
        %v292 = vrcp.pop %v291
        %v293 = vmul.f32 1.0, %v292
        %v294 = vlaneseq
        %v295 = vshrl.u32 %v294, 7
        %v296 = vsub.s32 0, %v295
        %v297 = vrot.slane %v293, %v296
        %299 = vbcast.lane.b32.xlu0 %v297, 256
        %v300 = vpop.permute.xlu0 %299
        %v301 = vmul.f32 %v200, %v300
        %v302 = vmul.f32 %v201, %v300
        %303 = vst [vmem:[%s199] sm:$0xff] %v301
        %304 = vst [vmem:[%s199 + $0x8] sm:$0xff] %v302
        %s305 = sand.u32 %s97, 1
        %s306 = scalar_lea.sflag [#allocation4], %s305
        %s307 = sand.u32 %s97, 1
        %s308 = smul.addr %s307, 16
        %s309 = scalar_lea.vmem [#allocation7], %s308
        // Predicated region
        $region41: #{tpu_custom_call.1} parent=31 // pred_check
          %p310 = pneg %p107
        $region42: #{tpu_custom_call.1} parent=31 // pred_check_branch
          %312 = sbr.rel (%p310) target = $region44
        $region43: #{tpu_custom_call.1} parent=31 // pred_region
          %s314 = ssub.s32 256, 256
          %315 = vsyncadd %s306, %s314
          %s316 = smul.addr %s21, 2
          %s317 = smul.addr %s316, 128
          %s318 = scalar_lea.hbm %s3, %s317
          %s320 = sshll.u32 %s309, 4
          %s321 = int_to_ptr.vmem [resolvable:$true] %s320
          %323 = dma.vmem_to_hbm [thread:$0]  %s321, 256, %s318, %s306
        $region44: #{tpu_custom_call.1} parent=31 // pred_fallthru
          _
      $region32: #{tpu_custom_call.1} parent=5 // pred_fallthru
        _
      %p324 = scmp.le.s32.totalorder 2, %s16
      // Predicated region
      $region45: #{tpu_custom_call.1} parent=5 // pred_check
        %p325 = pneg %p324
      $region46: #{tpu_custom_call.1} parent=5 // pred_check_branch
        %327 = sbr.rel (%p325) target = $region48
      $region47: #{tpu_custom_call.1} parent=5 // pred_region
        %s328 = ssub.s32 %s16, 2
        // Predicated region
        $region49: #{tpu_custom_call.1} parent=47 // pred_check
          %p329 = pneg %p113
        $region50: #{tpu_custom_call.1} parent=47 // pred_check_branch
          %331 = sbr.rel (%p329) target = $region52
        $region51: #{tpu_custom_call.1} parent=47 // pred_region
          %s332 = sand.u32 %s98, 1
          %s333 = scalar_lea.sflag [#allocation4], %s332
          %s334 = sand.u32 %s98, 1
          %s335 = smul.addr %s334, 16
          %s336 = scalar_lea.vmem [#allocation7], %s335
          %337 = dma.done %s333, 256
        $region52: #{tpu_custom_call.1} parent=47 // pred_fallthru
          _
      $region48: #{tpu_custom_call.1} parent=5 // pred_fallthru
        _
    $region6: #{tpu_custom_call.1} parent=1 // loop_footer
      %s20 = sadd.s32 1, %s16
    $region7: #{tpu_custom_call.1} parent=1 // loop_footer_branch
      %15 = sbr.rel target = $region3
    $region8: #{tpu_custom_call.1} parent=1 // loop_exit
      _
    %338 = vsyncpa [#allocation3], 1
    %s339 = scalar_lea.sflag [#allocation3], 1
    %340 = vsyncpa %s339, 1
    %341 = vsyncpa [#allocation6], 1
    %342 = vsyncpa [#allocation4], 1
    %s343 = scalar_lea.sflag [#allocation4], 1
    %344 = vsyncpa %s343, 1

</llo_original>
